<compile_context>
chip_gen: v7x
topology: tpu7x:2x2x1
jax: 0.10.0
libtpu: 0.0.40
codegen_flags: <defaults>
</compile_context>

<pallas_src>
import functools

import jax
import jax.numpy as jnp
from jax.experimental import pallas as pl
from jax.experimental.pallas import tpu as pltpu

_MiB = 1024 * 1024


def _layernorm2d_kernel(x_ref, w_ref, b_ref, o_ref, *, eps):
    """Channel LayerNorm; channels are axis=1 of the block (any rank)."""
    x = x_ref[...].astype(jnp.float32)
    # Two-pass (mean, then centered variance): matches the PyTorch reference
    # exactly and avoids the E[x^2] - mu^2 cancellation issue.
    mu = jnp.mean(x, axis=1, keepdims=True)
    xc = x - mu
    var = jnp.mean(xc * xc, axis=1, keepdims=True)      # biased variance
    y = xc * jax.lax.rsqrt(var + eps)
    w = w_ref[...].astype(jnp.float32)
    b = b_ref[...].astype(jnp.float32)
    o_ref[...] = (w * y + b).astype(o_ref.dtype)


def _sublane_multiple(dtype):
    # f32 -> 8 sublanes, bf16 -> 16, int8/fp8 -> 32 (packed along sublanes).
    return max(8, 32 // jnp.dtype(dtype).itemsize)


def _vmem_budget(itemsize):
    """Return (vmem_limit_bytes, target_elements_per_input_block)."""
    cap = 0
    try:
        cap = int(pltpu.get_tpu_info().vmem_capacity_bytes)
    except Exception:
        cap = 0
    if cap <= 0:
        try:
            kind = jax.devices()[0].device_kind.lower()
            cap = 64 * _MiB if "7" in kind else 128 * _MiB
        except Exception:
            cap = 64 * _MiB                      # conservative: smallest-VMEM gen
    # v7x has 64 MiB VMEM per TensorCore; v5e/v6e have 128 MiB physical.
    vmem_limit = 44 * _MiB if cap <= 64 * _MiB else 64 * _MiB
    # Per element cost of one grid step: 2 in + 2 out double-buffered copies of
    # the block (input dtype) plus ~3 block-sized f32 temporaries in the body.
    per_elem = 4 * itemsize + 3 * 4
    tile_elems = (vmem_limit * 3 // 4) // per_elem       # 25% headroom
    return vmem_limit, max(tile_elems, 8 * 128)


def _largest_divisor_at_most(n, cap):
    cap = max(1, min(n, cap))
    for d in range(cap, 0, -1):
        if n % d == 0:
            return d
    return 1


def layernorm2d(x_nchw, weight, bias, eps=1e-6):
    """x_nchw: (N, C, H, W); weight, bias: (C,). Returns (N, C, H, W)."""
    N, C, H, W = x_nchw.shape
    HW = H * W
    dtype = x_nchw.dtype
    itemsize = jnp.dtype(dtype).itemsize
    vmem_limit, tile_elems = _vmem_budget(itemsize)

    kernel = functools.partial(_layernorm2d_kernel, eps=eps)
    compiler_params = pltpu.CompilerParams(
        dimension_semantics=("parallel",),   # single flat axis: balanced 2-TC split on v7x
        vmem_limit_bytes=vmem_limit,
    )

    if HW % 128 == 0:
        # ---- Main path: (N, C, R, 128) layout, full vreg occupancy. ----
        R = HW // 128
        x4 = x_nchw.reshape(N, C, R, 128)      # metadata-only (trailing dims)
        w4 = weight.reshape(1, C, 1, 1)
        b4 = bias.reshape(1, C, 1, 1)
        elems_per_image = C * R * 128

        if elems_per_image <= tile_elems:
            # Small feature maps: pack several images per grid step.
            n_tile = _largest_divisor_at_most(N, tile_elems // elems_per_image)
            r_tile = R
            grid = (pl.cdiv(N, n_tile),)
            x_map = lambda i: (i, 0, 0, 0)
        else:
            n_tile = 1
            rows = max(8, (tile_elems // (C * 128)) // 8 * 8)
            r_tile = min(rows, (R // 8) * 8) if R >= 8 else R
            J = pl.cdiv(R, r_tile)
            grid = (N * J,)
            x_map = lambda i, J=J: (i // J, 0, i % J, 0)
        wb_map = lambda i: (0, 0, 0, 0)

        out4 = pl.pallas_call(
            kernel,
            out_shape=jax.ShapeDtypeStruct((N, C, R, 128), dtype),
            grid_spec=pltpu.PrefetchScalarGridSpec(
                num_scalar_prefetch=0,
                grid=grid,
                in_specs=[
                    pl.BlockSpec((n_tile, C, r_tile, 128), x_map),
                    pl.BlockSpec((1, C, 1, 1), wb_map),
                    pl.BlockSpec((1, C, 1, 1), wb_map),
                ],
                out_specs=pl.BlockSpec((n_tile, C, r_tile, 128), x_map),
            ),
            compiler_params=compiler_params,
        )(x4, w4, b4)
        return out4.reshape(N, C, H, W)

    # ---- Fallback path: (N, C, HW), channels on sublanes. ----
    x3 = x_nchw.reshape(N, C, HW)
    w3 = weight.reshape(1, C, 1)
    b3 = bias.reshape(1, C, 1)
    sub = _sublane_multiple(dtype)
    c_pad = pl.cdiv(C, sub) * sub              # sublane padding in VMEM math

    if HW < 128:
        # Tiny feature maps (7x7, 14x14, ...): pack several images per step so
        # each DMA is one contiguous slab and step overhead amortizes.
        # TODO(synk): lane occupancy is HW/128 here (masked vst); a channels-last
        # upstream layout is the real fix if these shapes dominate.
        hw_pad = 128
        n_tile = _largest_divisor_at_most(N, tile_elems // (c_pad * hw_pad))
        hw_tile = HW
        grid = (pl.cdiv(N, n_tile),)
        x_map = lambda i: (i, 0, 0)
    else:
        n_tile = 1
        lanes = max(128, (tile_elems // c_pad) // 128 * 128)
        hw_tile = min(lanes, (HW // 128) * 128)
        J = pl.cdiv(HW, hw_tile)               # partial last block masked
        grid = (N * J,)
        x_map = lambda i, J=J: (i // J, 0, i % J)
    wb_map = lambda i: (0, 0, 0)

    out3 = pl.pallas_call(
        kernel,
        out_shape=jax.ShapeDtypeStruct((N, C, HW), dtype),
        grid_spec=pltpu.PrefetchScalarGridSpec(
            num_scalar_prefetch=0,
            grid=grid,
            in_specs=[
                pl.BlockSpec((n_tile, C, hw_tile), x_map),
                pl.BlockSpec((1, C, 1), wb_map),
                pl.BlockSpec((1, C, 1), wb_map),
            ],
            out_specs=pl.BlockSpec((n_tile, C, hw_tile), x_map),
        ),
        compiler_params=compiler_params,
    )(x3, w3, b3)
    return out3.reshape(N, C, H, W)


def layernorm2d_ref(x, weight, bias, eps=1e-6):
    # Pure-JAX reference matching the PyTorch forward exactly.
    mu = jnp.mean(x, axis=1, keepdims=True)
    var = jnp.mean((x - mu) ** 2, axis=1, keepdims=True)
    y = (x - mu) / jnp.sqrt(var + eps)
    return weight.reshape(1, -1, 1, 1) * y + bias.reshape(1, -1, 1, 1)


if __name__ == "__main__":
    key = jax.random.PRNGKey(0)
    kx, kw, kb = jax.random.split(key, 3)

    N, C, H, W = 2, 4, 16, 16
    x = jax.random.normal(kx, (N, C, H, W), dtype=jnp.float32)

    # Module __init__: weight = ones(C), bias = zeros(C). Add deterministic
    # perturbations so the affine path is actually exercised.
    weight = jnp.ones((C,), dtype=jnp.float32) + 0.1 * jax.random.normal(kw, (C,))
    bias = jnp.zeros((C,), dtype=jnp.float32) + 0.1 * jax.random.normal(kb, (C,))

    # Main path (HW multiple of 128).
    out = jax.block_until_ready(layernorm2d(x, weight, bias, eps=1e-6))
    ref = layernorm2d_ref(x, weight, bias, eps=1e-6)
    assert out.shape == (N, C, H, W)
    assert jnp.allclose(out, ref, atol=1e-5, rtol=1e-5), "mismatch (main path)"

    # Fallback paths: HW < 128 (7x7) and HW >= 128 but not a multiple of 128 (12x12).
    for (h2, w2) in [(7, 7), (12, 12)]:
        x2 = jax.random.normal(kx, (N, C, h2, w2), dtype=jnp.float32)
        out2 = jax.block_until_ready(layernorm2d(x2, weight, bias, eps=1e-6))
        ref2 = layernorm2d_ref(x2, weight, bias, eps=1e-6)
        assert out2.shape == (N, C, h2, w2)
        assert jnp.allclose(out2, ref2, atol=1e-5, rtol=1e-5), f"mismatch ({h2}x{w2})"

    print("KERNEL_OK")
</pallas_src>

<mosaic_0001>
module attributes {stable_mosaic.version = 11 : i64} {
  func.func @_layernorm2d_kernel(%arg0: i32, %arg1: memref<2x4x2x128xf32, #tpu.memory_space<vmem>>, %arg2: memref<1x4x1x1xf32, #tpu.memory_space<vmem>>, %arg3: memref<1x4x1x1xf32, #tpu.memory_space<vmem>>, %arg4: memref<2x4x2x128xf32, #tpu.memory_space<vmem>>) attributes {dimension_semantics = [#tpu.dimension_semantics<parallel>], iteration_bounds = array<i64: 1>, scalar_prefetch = 0 : i64, scratch_operands = 0 : i64, tpu.core_type = #tpu.core_type<tc>, window_params = [{transform_indices = @transform_0, window_bounds = array<i64: 2, 4, 2, 128>}, {pipeline_mode = #tpu.pipeline_mode<synchronous>, transform_indices = @transform_1, window_bounds = array<i64: 1, 4, 1, 1>}, {pipeline_mode = #tpu.pipeline_mode<synchronous>, transform_indices = @transform_2, window_bounds = array<i64: 1, 4, 1, 1>}, {transform_indices = @transform_3, window_bounds = array<i64: 2, 4, 2, 128>}]} {
    %c0 = arith.constant 0 : index
    %c0_0 = arith.constant 0 : index
    %c0_1 = arith.constant 0 : index
    %c0_2 = arith.constant 0 : index
    %0 = vector.load %arg1[%c0, %c0_0, %c0_1, %c0_2] : memref<2x4x2x128xf32, #tpu.memory_space<vmem>>, vector<2x4x2x128xf32>
    %cst = arith.constant dense<0.000000e+00> : vector<2x2x128xf32>
    %1 = vector.multi_reduction <add>, %0, %cst [1] : vector<2x4x2x128xf32> to vector<2x2x128xf32>
    %2 = vector.shape_cast %1 : vector<2x2x128xf32> to vector<2x1x2x128xf32>
    %cst_3 = arith.constant 4.000000e+00 : f32
    %3 = vector.broadcast %cst_3 : f32 to vector<2x1x2x128xf32>
    %4 = arith.divf %2, %3 : vector<2x1x2x128xf32>
    %5 = vector.broadcast %4 : vector<2x1x2x128xf32> to vector<2x4x2x128xf32>
    %6 = arith.subf %0, %5 : vector<2x4x2x128xf32>
    %7 = arith.mulf %6, %6 : vector<2x4x2x128xf32>
    %cst_4 = arith.constant dense<0.000000e+00> : vector<2x2x128xf32>
    %8 = vector.multi_reduction <add>, %7, %cst_4 [1] : vector<2x4x2x128xf32> to vector<2x2x128xf32>
    %9 = vector.shape_cast %8 : vector<2x2x128xf32> to vector<2x1x2x128xf32>
    %cst_5 = arith.constant 4.000000e+00 : f32
    %10 = vector.broadcast %cst_5 : f32 to vector<2x1x2x128xf32>
    %11 = arith.divf %9, %10 : vector<2x1x2x128xf32>
    %cst_6 = arith.constant 9.99999997E-7 : f32
    %12 = vector.broadcast %cst_6 : f32 to vector<2x1x2x128xf32>
    %13 = arith.addf %11, %12 : vector<2x1x2x128xf32>
    %14 = math.rsqrt %13 : vector<2x1x2x128xf32>
    %15 = vector.broadcast %14 : vector<2x1x2x128xf32> to vector<2x4x2x128xf32>
    %16 = arith.mulf %6, %15 : vector<2x4x2x128xf32>
    %c0_7 = arith.constant 0 : index
    %c0_8 = arith.constant 0 : index
    %c0_9 = arith.constant 0 : index
    %c0_10 = arith.constant 0 : index
    %17 = vector.load %arg2[%c0_7, %c0_8, %c0_9, %c0_10] : memref<1x4x1x1xf32, #tpu.memory_space<vmem>>, vector<1x4x1x1xf32>
    %c0_11 = arith.constant 0 : index
    %c0_12 = arith.constant 0 : index
    %c0_13 = arith.constant 0 : index
    %c0_14 = arith.constant 0 : index
    %18 = vector.load %arg3[%c0_11, %c0_12, %c0_13, %c0_14] : memref<1x4x1x1xf32, #tpu.memory_space<vmem>>, vector<1x4x1x1xf32>
    %19 = vector.broadcast %17 : vector<1x4x1x1xf32> to vector<2x4x2x128xf32>
    %20 = arith.mulf %19, %16 : vector<2x4x2x128xf32>
    %21 = vector.broadcast %18 : vector<1x4x1x1xf32> to vector<2x4x2x128xf32>
    %22 = arith.addf %20, %21 : vector<2x4x2x128xf32>
    %c0_15 = arith.constant 0 : index
    %c0_16 = arith.constant 0 : index
    %c0_17 = arith.constant 0 : index
    %c0_18 = arith.constant 0 : index
    %23 = vector.load %arg4[%c0_15, %c0_16, %c0_17, %c0_18] : memref<2x4x2x128xf32, #tpu.memory_space<vmem>>, vector<2x4x2x128xf32>
    tpu.vector_store %arg4[%c0_15, %c0_16, %c0_17, %c0_18], %22 {strides = array<i32>} : memref<2x4x2x128xf32, #tpu.memory_space<vmem>>, vector<2x4x2x128xf32>,
    return
  }
  func.func @transform_0(%arg0: i32) -> (i32, i32, i32, i32) {
    %c0_i32 = arith.constant 0 : i32
    %c0_i32_0 = arith.constant 0 : i32
    %c0_i32_1 = arith.constant 0 : i32
    %c0_i32_2 = arith.constant 0 : i32
    return %arg0, %c0_i32, %c0_i32_0, %c0_i32_1 : i32, i32, i32, i32
  }
  func.func @transform_1(%arg0: i32) -> (i32, i32, i32, i32) {
    %c0_i32 = arith.constant 0 : i32
    %c0_i32_0 = arith.constant 0 : i32
    %c0_i32_1 = arith.constant 0 : i32
    %c0_i32_2 = arith.constant 0 : i32
    %c0_i32_3 = arith.constant 0 : i32
    return %c0_i32, %c0_i32_0, %c0_i32_1, %c0_i32_2 : i32, i32, i32, i32
  }
  func.func @transform_2(%arg0: i32) -> (i32, i32, i32, i32) {
    %c0_i32 = arith.constant 0 : i32
    %c0_i32_0 = arith.constant 0 : i32
    %c0_i32_1 = arith.constant 0 : i32
    %c0_i32_2 = arith.constant 0 : i32
    %c0_i32_3 = arith.constant 0 : i32
    return %c0_i32, %c0_i32_0, %c0_i32_1, %c0_i32_2 : i32, i32, i32, i32
  }
  func.func @transform_3(%arg0: i32) -> (i32, i32, i32, i32) {
    %c0_i32 = arith.constant 0 : i32
    %c0_i32_0 = arith.constant 0 : i32
    %c0_i32_1 = arith.constant 0 : i32
    %c0_i32_2 = arith.constant 0 : i32
    return %arg0, %c0_i32, %c0_i32_0, %c0_i32_1 : i32, i32, i32, i32
  }
}

</mosaic_0001>

<llo_original>
// kernel: tpu_custom_call.1
$region0: #{tpu_custom_call.1}
  #allocation0 [shape = 'u32[]', space=smem, size = 0x4, offset = 0x4, fixed_abs, tag = 'smem constant byte address 0x4 - core index']
  #allocation1 [shape = 'u32[144,128]{1,0:T(1,128)}', space=vmem, size = 0x12000, scoped, tag = 'internal scratch']
  %s0 = inlined_call_operand.hbm [shape: f32[2,4,2,128], index: 0, kind: input, shape index: {}]
  %s1 = inlined_call_operand.hbm [shape: f32[1,4,1,1], index: 1, kind: input, shape index: {}]
  %s2 = inlined_call_operand.hbm [shape: f32[1,4,1,1], index: 2, kind: input, shape index: {}]
  %s3 = inlined_call_operand.hbm [shape: f32[2,4,2,128], index: 3, kind: output, shape index: {}]
  %s4 = sld [smem:[#allocation0]]
  $region34: #{tpu_custom_call.1} parent=0
    _
  %s6 = ssub.s32 1, %s4
  %s7 = scalar_select 0, %s6, %s4
  $region1: #{tpu_custom_call.1} parent=0
    #allocation2 [shape = 'u8[8192]{0}', space=vmem, size = 0x2000, scoped, tag = 'input window, operand 0, single buffered']
    #allocation3 [shape = 's32[1]{0}', space=sflag, size = 0x4, scoped, tag = 'scoped memory for tpu_custom_call.1']
    #allocation4 [shape = 's32[1]{0}', space=sflag, size = 0x4, scoped, tag = 'scoped memory for tpu_custom_call.1']
    #allocation5 [shape = 'u8[2048]{0}', space=vmem, size = 0x800, scoped, tag = 'input window, operand 1, single buffered']
    #allocation6 [shape = 's32[1]{0}', space=sflag, size = 0x4, scoped, tag = 'scoped memory for tpu_custom_call.1']
    #allocation7 [shape = 'u8[2048]{0}', space=vmem, size = 0x800, scoped, tag = 'input window, operand 2, single buffered']
    #allocation8 [shape = 'u8[8192]{0}', space=vmem, size = 0x2000, scoped, tag = 'output window, operand 0, single buffered']
    %8 = vsyncpa [#allocation3], 0
    %9 = vsyncpa [#allocation6], 0
    %10 = vsyncpa [#allocation4], 0
    // Predicated region
    $region2: #{tpu_custom_call.1} parent=1 // pred_check
      _
    $region3: #{tpu_custom_call.1} parent=1 // pred_check_branch
      %12 = sbr.rel (0) target = $region5
    $region4: #{tpu_custom_call.1} parent=1 // pred_region
      %s14 = ssub.s32 256, 256
      %15 = vsyncadd [#allocation3], %s14
      %s16 = sshll.u32 [#allocation2], 4
      %s17 = int_to_ptr.vmem [resolvable:$true] %s16
      %22 = dma.hbm_to_vmem [thread:$0]  %s0, 256, %s17, [#allocation3], 32, 32, 2
    $region5: #{tpu_custom_call.1} parent=1 // pred_fallthru
      _
    // Predicated region
    $region6: #{tpu_custom_call.1} parent=1 // pred_check
      _
    $region7: #{tpu_custom_call.1} parent=1 // pred_check_branch
      %24 = sbr.rel (0) target = $region9
    $region8: #{tpu_custom_call.1} parent=1 // pred_region
      %s26 = ssub.s32 64, 64
      %27 = vsyncadd [#allocation6], %s26
      %s28 = sshll.u32 [#allocation5], 4
      %s29 = int_to_ptr.vmem [resolvable:$true] %s28
      %34 = dma.hbm_to_vmem [thread:$0]  %s1, 64, %s29, [#allocation6], 16, 16, 1
    $region9: #{tpu_custom_call.1} parent=1 // pred_fallthru
      _
    // Predicated region
    $region10: #{tpu_custom_call.1} parent=1 // pred_check
      _
    $region11: #{tpu_custom_call.1} parent=1 // pred_check_branch
      %36 = sbr.rel (0) target = $region13
    $region12: #{tpu_custom_call.1} parent=1 // pred_region
      %s38 = ssub.s32 64, 64
      %39 = vsyncadd [#allocation6], %s38
      %s40 = sshll.u32 [#allocation7], 4
      %s41 = int_to_ptr.vmem [resolvable:$true] %s40
      %46 = dma.hbm_to_vmem [thread:$0]  %s2, 64, %s41, [#allocation6], 16, 16, 1
    $region13: #{tpu_custom_call.1} parent=1 // pred_fallthru
      _
    // Predicated region
    $region14: #{tpu_custom_call.1} parent=1 // pred_check
      _
    $region15: #{tpu_custom_call.1} parent=1 // pred_check_branch
      %48 = sbr.rel (0) target = $region17
    $region16: #{tpu_custom_call.1} parent=1 // pred_region
      %49 = dma.done [#allocation3], 256
    $region17: #{tpu_custom_call.1} parent=1 // pred_fallthru
      _
    // Predicated region
    $region18: #{tpu_custom_call.1} parent=1 // pred_check
      _
    $region19: #{tpu_custom_call.1} parent=1 // pred_check_branch
      %51 = sbr.rel (0) target = $region21
    $region20: #{tpu_custom_call.1} parent=1 // pred_region
      %52 = dma.done [#allocation6], 64
    $region21: #{tpu_custom_call.1} parent=1 // pred_fallthru
      _
    // Predicated region
    $region22: #{tpu_custom_call.1} parent=1 // pred_check
      _
    $region23: #{tpu_custom_call.1} parent=1 // pred_check_branch
      %54 = sbr.rel (0) target = $region25
    $region24: #{tpu_custom_call.1} parent=1 // pred_region
      %55 = dma.done [#allocation6], 64
    $region25: #{tpu_custom_call.1} parent=1 // pred_fallthru
      _
    %v56 = vld [vmem:[#allocation2] sm:$0x3]
    %v57 = vld [vmem:[#allocation2 + $0x2] sm:$0x3]
    %v58 = vld [vmem:[#allocation2 + $0x4] sm:$0x3]
    %v59 = vld [vmem:[#allocation2 + $0x6] sm:$0x3]
    %v60 = vld [vmem:[#allocation2 + $0x8] sm:$0x3]
    %v61 = vld [vmem:[#allocation2 + $0xa] sm:$0x3]
    %v62 = vld [vmem:[#allocation2 + $0xc] sm:$0x3]
    %v63 = vld [vmem:[#allocation2 + $0xe] sm:$0x3]
    %vm64 = vcmask 1041408
    %v65 = vsel %vm64, %v56, 0.0
    %v66 = vsel %vm64, %v57, 0.0
    %v67 = vadd.f32 %v65, %v66
    %v68 = vsel %vm64, %v58, 0.0
    %v69 = vadd.f32 %v67, %v68
    %v70 = vsel %vm64, %v59, 0.0
    %v71 = vadd.f32 %v69, %v70
    %v72 = vsel %vm64, %v60, 0.0
    %v73 = vsel %vm64, %v61, 0.0
    %v74 = vadd.f32 %v72, %v73
    %v75 = vsel %vm64, %v62, 0.0
    %v76 = vadd.f32 %v74, %v75
    %v77 = vsel %vm64, %v63, 0.0
    %v78 = vadd.f32 %v76, %v77
    %v79 = vrcp.pop 4.0
    %v80 = vmul.f32 %v71, %v79
    %v81 = vmul.f32 %v78, %v79
    %v82 = vsub.f32 %v56, %v80
    %v83 = vsub.f32 %v57, %v80
    %v84 = vsub.f32 %v58, %v80
    %v85 = vsub.f32 %v59, %v80
    %v86 = vsub.f32 %v60, %v81
    %v87 = vsub.f32 %v61, %v81
    %v88 = vsub.f32 %v62, %v81
    %v89 = vsub.f32 %v63, %v81
    %v90 = vmul.f32 %v82, %v82
    %v91 = vmul.f32 %v83, %v83
    %v92 = vmul.f32 %v84, %v84
    %v93 = vmul.f32 %v85, %v85
    %v94 = vmul.f32 %v86, %v86
    %v95 = vmul.f32 %v87, %v87
    %v96 = vmul.f32 %v88, %v88
    %v97 = vmul.f32 %v89, %v89
    %v98 = vsel %vm64, %v90, 0.0
    %v99 = vsel %vm64, %v91, 0.0
    %v100 = vadd.f32 %v98, %v99
    %v101 = vsel %vm64, %v92, 0.0
    %v102 = vadd.f32 %v100, %v101
    %v103 = vsel %vm64, %v93, 0.0
    %v104 = vadd.f32 %v102, %v103
    %v105 = vsel %vm64, %v94, 0.0
    %v106 = vsel %vm64, %v95, 0.0
    %v107 = vadd.f32 %v105, %v106
    %v108 = vsel %vm64, %v96, 0.0
    %v109 = vadd.f32 %v107, %v108
    %v110 = vsel %vm64, %v97, 0.0
    %v111 = vadd.f32 %v109, %v110
    %v112 = vmul.f32 %v104, %v79
    %v113 = vmul.f32 %v111, %v79
    %v114 = vadd.f32 %v112, 1e-06
    %v115 = vadd.f32 %v113, 1e-06
    %v116 = vrsqrt.pop %v114
    %v117 = vrsqrt.pop %v115
    %v118 = vmul.f32 %v82, %v116
    %v119 = vmul.f32 %v83, %v116
    %v120 = vmul.f32 %v84, %v116
    %v121 = vmul.f32 %v85, %v116
    %v122 = vmul.f32 %v86, %v117
    %v123 = vmul.f32 %v87, %v117
    %v124 = vmul.f32 %v88, %v117
    %v125 = vmul.f32 %v89, %v117
    %v126 = vld [vmem:[#allocation5] sm:$0x1]
    %v127 = vld [vmem:[#allocation5 + $0x1] sm:$0x1]
    %v128 = vld [vmem:[#allocation5 + $0x2] sm:$0x1]
    %v129 = vld [vmem:[#allocation5 + $0x3] sm:$0x1]
    %v130 = vld [vmem:[#allocation7] sm:$0x1]
    %v131 = vld [vmem:[#allocation7 + $0x1] sm:$0x1]
    %v132 = vld [vmem:[#allocation7 + $0x2] sm:$0x1]
    %v133 = vld [vmem:[#allocation7 + $0x3] sm:$0x1]
    %v138 = vlaneseq
    %v139 = vshrl.u32 %v138, 7
    %v140 = vsub.s32 0, %v139
    %v141 = vrot.slane %v126, %v140
    %v142 = vlaneseq
    %v143 = vshrl.u32 %v142, 7
    %v144 = vsub.s32 0, %v143
    %v145 = vrot.slane %v127, %v144
    %v146 = vlaneseq
    %v147 = vshrl.u32 %v146, 7
    %v148 = vsub.s32 0, %v147
    %v149 = vrot.slane %v128, %v148
    %v150 = vlaneseq
    %v151 = vshrl.u32 %v150, 7
    %v152 = vsub.s32 0, %v151
    %v153 = vrot.slane %v129, %v152
    %154 = vset.pattern.permute.xlu0 0
    %155 = vperm.xlu0 %154, %v141
    %v156 = vpop.permute.xlu0 %155
    %158 = vset.pattern.permute.xlu0 0
    %159 = vperm.xlu0 %158, %v145
    %v160 = vpop.permute.xlu0 %159
    %162 = vset.pattern.permute.xlu0 0
    %163 = vperm.xlu0 %162, %v149
    %v164 = vpop.permute.xlu0 %163
    %166 = vset.pattern.permute.xlu0 0
    %167 = vperm.xlu0 %166, %v153
    %v168 = vpop.permute.xlu0 %167
    %v170 = vmul.f32 %v156, %v118
    %v171 = vmul.f32 %v160, %v119
    %v172 = vmul.f32 %v164, %v120
    %v173 = vmul.f32 %v168, %v121
    %v174 = vmul.f32 %v156, %v122
    %v175 = vmul.f32 %v160, %v123
    %v176 = vmul.f32 %v164, %v124
    %v177 = vmul.f32 %v168, %v125
    %v182 = vlaneseq
    %v183 = vshrl.u32 %v182, 7
    %v184 = vsub.s32 0, %v183
    %v185 = vrot.slane %v130, %v184
    %v186 = vlaneseq
    %v187 = vshrl.u32 %v186, 7
    %v188 = vsub.s32 0, %v187
    %v189 = vrot.slane %v131, %v188
    %v190 = vlaneseq
    %v191 = vshrl.u32 %v190, 7
    %v192 = vsub.s32 0, %v191
    %v193 = vrot.slane %v132, %v192
    %v194 = vlaneseq
    %v195 = vshrl.u32 %v194, 7
    %v196 = vsub.s32 0, %v195
    %v197 = vrot.slane %v133, %v196
    %198 = vset.pattern.permute.xlu0 0
    %199 = vperm.xlu0 %198, %v185
    %v200 = vpop.permute.xlu0 %199
    %202 = vset.pattern.permute.xlu0 0
    %203 = vperm.xlu0 %202, %v189
    %v204 = vpop.permute.xlu0 %203
    %206 = vset.pattern.permute.xlu0 0
    %207 = vperm.xlu0 %206, %v193
    %v208 = vpop.permute.xlu0 %207
    %210 = vset.pattern.permute.xlu0 0
    %211 = vperm.xlu0 %210, %v197
    %v212 = vpop.permute.xlu0 %211
    %v214 = vadd.f32 %v170, %v200
    %v215 = vadd.f32 %v171, %v204
    %v216 = vadd.f32 %v172, %v208
    %v217 = vadd.f32 %v173, %v212
    %v218 = vadd.f32 %v174, %v200
    %v219 = vadd.f32 %v175, %v204
    %v220 = vadd.f32 %v176, %v208
    %v221 = vadd.f32 %v177, %v212
    %222 = vst [vmem:[#allocation8] sm:$0x3] %v214
    %223 = vst [vmem:[#allocation8 + $0x2] sm:$0x3] %v215
    %224 = vst [vmem:[#allocation8 + $0x4] sm:$0x3] %v216
    %225 = vst [vmem:[#allocation8 + $0x6] sm:$0x3] %v217
    %226 = vst [vmem:[#allocation8 + $0x8] sm:$0x3] %v218
    %227 = vst [vmem:[#allocation8 + $0xa] sm:$0x3] %v219
    %228 = vst [vmem:[#allocation8 + $0xc] sm:$0x3] %v220
    %229 = vst [vmem:[#allocation8 + $0xe] sm:$0x3] %v221
    // Predicated region
    $region26: #{tpu_custom_call.1} parent=1 // pred_check
      _
    $region27: #{tpu_custom_call.1} parent=1 // pred_check_branch
      %231 = sbr.rel (0) target = $region29
    $region28: #{tpu_custom_call.1} parent=1 // pred_region
      %s233 = ssub.s32 256, 256
      %234 = vsyncadd [#allocation4], %s233
      %s235 = sshll.u32 [#allocation8], 4
      %s236 = int_to_ptr.vmem [resolvable:$true] %s235
      %241 = dma.vmem_to_hbm [thread:$0]  %s236, 256, %s3, [#allocation4], 32, 32, 2
    $region29: #{tpu_custom_call.1} parent=1 // pred_fallthru
      _
    // Predicated region
    $region30: #{tpu_custom_call.1} parent=1 // pred_check
      _
    $region31: #{tpu_custom_call.1} parent=1 // pred_check_branch
      %243 = sbr.rel (0) target = $region33
    $region32: #{tpu_custom_call.1} parent=1 // pred_region
      %244 = dma.done [#allocation4], 256
    $region33: #{tpu_custom_call.1} parent=1 // pred_fallthru
      _
    %245 = vsyncpa [#allocation3], 1
    %246 = vsyncpa [#allocation6], 1
    %247 = vsyncpa [#allocation4], 1

</llo_original>
